<compile_context>
chip_gen: v7x
topology: tpu7x:2x2x1
jax: 0.10.0
libtpu: 0.0.40
codegen_flags: <defaults>
</compile_context>

<pallas_src>
import jax
import jax.numpy as jnp
from jax.experimental import pallas as pl
from jax.experimental.pallas import tpu as pltpu


def _mapping_proxy_kernel(x_ref, std_ref, mean_ref, o_ref):
    # Purely elementwise on the VPU. std/mean are (1, F) and broadcast over
    # the sublane (batch) axis of the (TB, F) x block.
    y = std_ref[...] * x_ref[...] + mean_ref[...]
    slope = jnp.asarray(0.2, dtype=y.dtype)
    # max(y, 0.2*y) == LeakyReLU(0.2)(y)   (0.2*y > y  iff  y < 0)
    o_ref[...] = jnp.maximum(y, slope * y).astype(o_ref.dtype)


def _round_up(x, m):
    return ((x + m - 1) // m) * m


def _chip_defaults():
    """Generation-aware block target and TensorCore count (conservative)."""
    try:
        kind = jax.devices()[0].device_kind.lower()
    except Exception:
        kind = ""
    is_v5e = "v5e" in kind or ("v5" in kind and "lite" in kind)
    # v7x has 2 TensorCores per chip; v5e/v6e have 1.
    num_cores = 2 if "7" in kind else 1
    # ~4 MiB slabs on v6e/v7x (roofline keeps creeping up to ~4 MiB blocks),
    # ~3 MiB on v5e (smaller scoped-VMEM default; we also raise the limit).
    target_bytes = (3 << 20) if is_v5e else (4 << 20)
    return target_bytes, num_cores


def _pick_batch_tile(B, row_bytes, *, sublane, target_bytes, num_cores):
    """Pick TB so each (TB, F) slab is ~target_bytes.

    Returns either the full batch B (single block — legal regardless of
    B % sublane) or a multiple of `sublane`. On multi-TC chips (v7x) the
    batch is split into >= num_cores balanced blocks whenever it is big
    enough, so both TensorCores stream HBM concurrently.
    """
    tb = max(sublane, (target_bytes // max(1, row_bytes)) // sublane * sublane)

    if tb >= B:
        if num_cores > 1 and B >= 2 * sublane:
            # Split the full batch across TensorCores: >= 2 balanced steps.
            split = _round_up(-(-B // num_cores), sublane)  # round_up(cdiv(B, nc), sublane)
            return min(split, _round_up(B, sublane))
        return B  # one block covering the whole batch

    # Batch is actually tiled: rebalance so the last step isn't tiny, and on
    # multi-TC chips force the step count to a multiple of num_cores.
    steps = -(-B // tb)
    if num_cores > 1 and steps % num_cores != 0:
        steps = _round_up(steps, num_cores)
    per_step = _round_up(-(-B // steps), sublane)
    if sublane <= per_step <= tb:
        tb = per_step
    return tb


def mapping_proxy(x, std, mean, *, min_pallas_bytes=1 << 20, donate_x=False):
    """x: (B, L, D); std/mean: (L, D) -> LeakyReLU(0.2)(std * x + mean)."""
    B, L, D = x.shape
    assert std.shape == (L, D) and mean.shape == (L, D)
    F = L * D
    itemsize = jnp.dtype(x.dtype).itemsize

    # Small-input fast path: 3 flops/element, pure HBM bandwidth. Below ~1 MiB
    # the pallas_call launch + pipeline warm-up dwarfs the traffic; letting XLA
    # fuse it into the adjacent StyleGAN consumer is strictly better.
    if B * F * itemsize < min_pallas_bytes:
        y = std[None] * x + mean[None]
        return jnp.maximum(y, jnp.asarray(0.2, dtype=y.dtype) * y).astype(x.dtype)

    # Layout plumbing only: lane-dense (B, L*D) view, params as (1, L*D).
    x2 = x.reshape(B, F)
    std2 = std.reshape(1, F)
    mean2 = mean.reshape(1, F)

    # Lane padding: keep the output store a full-lane unmasked vst.
    F_pad = _round_up(F, 128)
    if F_pad != F:
        pad = F_pad - F
        x2 = jnp.pad(x2, ((0, 0), (0, pad)))
        std2 = jnp.pad(std2, ((0, 0), (0, pad)))
        mean2 = jnp.pad(mean2, ((0, 0), (0, pad)))

    # Dtype-aware sublane rounding: f32 -> 8, bf16 -> 16, int8/fp8 -> 32.
    sublane = max(8, 8 * (4 // itemsize))

    target_bytes, num_cores = _chip_defaults()
    row_bytes = F_pad * itemsize
    tb = _pick_batch_tile(B, row_bytes,
                          sublane=sublane,
                          target_bytes=target_bytes,
                          num_cores=num_cores)
    grid = (pl.cdiv(B, tb),)

    # Explicit VMEM budget: double-buffered x + out blocks, double-buffered
    # (tiny, resident) params, plus headroom. Floored at 16 MiB, capped well
    # under v7x's 64 MiB physical VMEM.
    p_itemsize = jnp.dtype(std.dtype).itemsize
    blk_bytes = tb * F_pad * itemsize
    param_bytes = F_pad * p_itemsize
    vmem_needed = 4 * blk_bytes + 4 * param_bytes
    vmem_limit = int(min(max(vmem_needed + (8 << 20), 16 << 20), 48 << 20))

    n = B * F
    cost = pl.CostEstimate(
        flops=3 * n,
        transcendentals=0,
        bytes_accessed=itemsize * 2 * n + 2 * F * p_itemsize,
    )

    out2 = pl.pallas_call(
        _mapping_proxy_kernel,
        out_shape=jax.ShapeDtypeStruct((B, F_pad), x.dtype),
        grid_spec=pltpu.PrefetchScalarGridSpec(
            num_scalar_prefetch=0,
            grid=grid,
            in_specs=[
                pl.BlockSpec((tb, F_pad), lambda b: (b, 0)),   # x: one batch slab per step
                pl.BlockSpec((1, F_pad), lambda b: (0, 0)),    # std: constant index -> VMEM-resident
                pl.BlockSpec((1, F_pad), lambda b: (0, 0)),    # mean: constant index -> VMEM-resident
            ],
            out_specs=pl.BlockSpec((tb, F_pad), lambda b: (b, 0)),
        ),
        compiler_params=pltpu.CompilerParams(
            dimension_semantics=("parallel",),
            vmem_limit_bytes=vmem_limit,
        ),
        cost_estimate=cost,
        # Memory/allocation win only (same bytes moved); opt-in because the
        # caller must no longer need x.
        input_output_aliases=({0: 0} if donate_x else {}),
    )(x2, std2, mean2)

    if F_pad != F:
        out2 = out2[:, :F]
    return out2.reshape(B, L, D)


def reference(x, std, mean):
    y = std[None] * x + mean[None]
    return jnp.where(y >= 0, y, 0.2 * y)


if __name__ == "__main__":
    def make_inputs(key, B, L, D, dtype=jnp.float32):
        kx, km, ks = jax.random.split(key, 3)
        x = jax.random.normal(kx, (B, L, D), dtype=dtype)
        # Deterministic synthetic "gaussian_ft" parameters (not a checkpoint load).
        mean = jax.random.normal(km, (L, D), dtype=dtype) * 0.5
        std = jax.random.uniform(ks, (L, D), dtype=dtype, minval=0.5, maxval=1.5)
        return x, std, mean

    # 1) Small shape, default dispatch (fused jnp fast path — launch overhead
    #    would dominate a pallas_call at this size).
    x, std, mean = make_inputs(jax.random.PRNGKey(0), 2, 8, 128)
    out_fast = jax.block_until_ready(mapping_proxy(x, std, mean))
    assert out_fast.shape == (2, 8, 128)
    assert jnp.allclose(out_fast, reference(x, std, mean), atol=1e-6, rtol=1e-6)

    # 2) Same small shape with the Pallas path forced (lane-aligned F = 1024).
    out_pl = jax.block_until_ready(mapping_proxy(x, std, mean, min_pallas_bytes=0))
    assert out_pl.shape == (2, 8, 128)
    assert jnp.allclose(out_pl, reference(x, std, mean), atol=1e-6, rtol=1e-6)

    # 3) Non-lane-aligned F (L*D = 800) to exercise the lane-padding path.
    x2, std2, mean2 = make_inputs(jax.random.PRNGKey(1), 4, 8, 100)
    out_pad = jax.block_until_ready(mapping_proxy(x2, std2, mean2, min_pallas_bytes=0))
    assert out_pad.shape == (4, 8, 100)
    assert jnp.allclose(out_pad, reference(x2, std2, mean2), atol=1e-6, rtol=1e-6)

    print("KERNEL_OK")
</pallas_src>

<mosaic_0001>
module attributes {stable_mosaic.version = 11 : i64} {
  func.func @_mapping_proxy_kernel(%arg0: i32, %arg1: memref<2x1024xf32, #tpu.memory_space<vmem>>, %arg2: memref<1x1024xf32, #tpu.memory_space<vmem>>, %arg3: memref<1x1024xf32, #tpu.memory_space<vmem>>, %arg4: memref<2x1024xf32, #tpu.memory_space<vmem>>) attributes {dimension_semantics = [#tpu.dimension_semantics<parallel>], iteration_bounds = array<i64: 1>, scalar_prefetch = 0 : i64, scratch_operands = 0 : i64, tpu.core_type = #tpu.core_type<tc>, window_params = [{transform_indices = @transform_0, window_bounds = array<i64: 2, 1024>}, {pipeline_mode = #tpu.pipeline_mode<synchronous>, transform_indices = @transform_1, window_bounds = array<i64: 1, 1024>}, {pipeline_mode = #tpu.pipeline_mode<synchronous>, transform_indices = @transform_2, window_bounds = array<i64: 1, 1024>}, {transform_indices = @transform_3, window_bounds = array<i64: 2, 1024>}]} {
    %c0 = arith.constant 0 : index
    %c0_0 = arith.constant 0 : index
    %0 = vector.load %arg2[%c0, %c0_0] : memref<1x1024xf32, #tpu.memory_space<vmem>>, vector<1x1024xf32>
    %c0_1 = arith.constant 0 : index
    %c0_2 = arith.constant 0 : index
    %1 = vector.load %arg1[%c0_1, %c0_2] : memref<2x1024xf32, #tpu.memory_space<vmem>>, vector<2x1024xf32>
    %2 = vector.broadcast %0 : vector<1x1024xf32> to vector<2x1024xf32>
    %3 = arith.mulf %2, %1 : vector<2x1024xf32>
    %c0_3 = arith.constant 0 : index
    %c0_4 = arith.constant 0 : index
    %4 = vector.load %arg3[%c0_3, %c0_4] : memref<1x1024xf32, #tpu.memory_space<vmem>>, vector<1x1024xf32>
    %5 = vector.broadcast %4 : vector<1x1024xf32> to vector<2x1024xf32>
    %6 = arith.addf %3, %5 : vector<2x1024xf32>
    %cst = arith.constant 2.000000e-01 : f32
    %7 = vector.broadcast %cst : f32 to vector<2x1024xf32>
    %8 = arith.mulf %7, %6 : vector<2x1024xf32>
    %9 = arith.maximumf %6, %8 : vector<2x1024xf32>
    %c0_5 = arith.constant 0 : index
    %c0_6 = arith.constant 0 : index
    %10 = vector.load %arg4[%c0_5, %c0_6] : memref<2x1024xf32, #tpu.memory_space<vmem>>, vector<2x1024xf32>
    tpu.vector_store %arg4[%c0_5, %c0_6], %9 {strides = array<i32>} : memref<2x1024xf32, #tpu.memory_space<vmem>>, vector<2x1024xf32>,
    return
  }
  func.func @transform_0(%arg0: i32) -> (i32, i32) {
    %c0_i32 = arith.constant 0 : i32
    %c0_i32_0 = arith.constant 0 : i32
    return %arg0, %c0_i32 : i32, i32
  }
  func.func @transform_1(%arg0: i32) -> (i32, i32) {
    %c0_i32 = arith.constant 0 : i32
    %c0_i32_0 = arith.constant 0 : i32
    %c0_i32_1 = arith.constant 0 : i32
    return %c0_i32, %c0_i32_0 : i32, i32
  }
  func.func @transform_2(%arg0: i32) -> (i32, i32) {
    %c0_i32 = arith.constant 0 : i32
    %c0_i32_0 = arith.constant 0 : i32
    %c0_i32_1 = arith.constant 0 : i32
    return %c0_i32, %c0_i32_0 : i32, i32
  }
  func.func @transform_3(%arg0: i32) -> (i32, i32) {
    %c0_i32 = arith.constant 0 : i32
    %c0_i32_0 = arith.constant 0 : i32
    return %arg0, %c0_i32 : i32, i32
  }
}

</mosaic_0001>

<llo_original>
// kernel: tpu_custom_call.1
$region0: #{tpu_custom_call.1}
  #allocation0 [shape = 'u32[]', space=smem, size = 0x4, offset = 0x4, fixed_abs, tag = 'smem constant byte address 0x4 - core index']
  #allocation1 [shape = 'u32[144,128]{1,0:T(1,128)}', space=vmem, size = 0x12000, scoped, tag = 'internal scratch']
  %s0 = inlined_call_operand.hbm [shape: f32[2,1024], index: 0, kind: input, shape index: {}]
  %s1 = inlined_call_operand.hbm [shape: f32[1,1024], index: 1, kind: input, shape index: {}]
  %s2 = inlined_call_operand.hbm [shape: f32[1,1024], index: 2, kind: input, shape index: {}]
  %s3 = inlined_call_operand.hbm [shape: f32[2,1024], index: 3, kind: output, shape index: {}]
  %s4 = sld [smem:[#allocation0]]
  $region34: #{tpu_custom_call.1} parent=0
    _
  %s6 = ssub.s32 1, %s4
  %s7 = scalar_select 0, %s6, %s4
  $region1: #{tpu_custom_call.1} parent=0
    #allocation2 [shape = 'u8[8192]{0}', space=vmem, size = 0x2000, scoped, tag = 'input window, operand 0, single buffered']
    #allocation3 [shape = 's32[1]{0}', space=sflag, size = 0x4, scoped, tag = 'scoped memory for tpu_custom_call.1']
    #allocation4 [shape = 's32[1]{0}', space=sflag, size = 0x4, scoped, tag = 'scoped memory for tpu_custom_call.1']
    #allocation5 [shape = 'u8[4096]{0}', space=vmem, size = 0x1000, scoped, tag = 'input window, operand 1, single buffered']
    #allocation6 [shape = 's32[1]{0}', space=sflag, size = 0x4, scoped, tag = 'scoped memory for tpu_custom_call.1']
    #allocation7 [shape = 'u8[4096]{0}', space=vmem, size = 0x1000, scoped, tag = 'input window, operand 2, single buffered']
    #allocation8 [shape = 'u8[8192]{0}', space=vmem, size = 0x2000, scoped, tag = 'output window, operand 0, single buffered']
    %8 = vsyncpa [#allocation3], 0
    %9 = vsyncpa [#allocation6], 0
    %10 = vsyncpa [#allocation4], 0
    // Predicated region
    $region2: #{tpu_custom_call.1} parent=1 // pred_check
      _
    $region3: #{tpu_custom_call.1} parent=1 // pred_check_branch
      %12 = sbr.rel (0) target = $region5
    $region4: #{tpu_custom_call.1} parent=1 // pred_region
      %s14 = ssub.s32 256, 256
      %15 = vsyncadd [#allocation3], %s14
      %s17 = sshll.u32 [#allocation2], 4
      %s18 = int_to_ptr.vmem [resolvable:$true] %s17
      %20 = dma.hbm_to_vmem [thread:$0]  %s0, 256, %s18, [#allocation3]
    $region5: #{tpu_custom_call.1} parent=1 // pred_fallthru
      _
    // Predicated region
    $region6: #{tpu_custom_call.1} parent=1 // pred_check
      _
    $region7: #{tpu_custom_call.1} parent=1 // pred_check_branch
      %22 = sbr.rel (0) target = $region9
    $region8: #{tpu_custom_call.1} parent=1 // pred_region
      %s24 = ssub.s32 128, 128
      %25 = vsyncadd [#allocation6], %s24
      %s27 = sshll.u32 [#allocation5], 4
      %s28 = int_to_ptr.vmem [resolvable:$true] %s27
      %30 = dma.hbm_to_vmem [thread:$0]  %s1, 128, %s28, [#allocation6]
    $region9: #{tpu_custom_call.1} parent=1 // pred_fallthru
      _
    // Predicated region
    $region10: #{tpu_custom_call.1} parent=1 // pred_check
      _
    $region11: #{tpu_custom_call.1} parent=1 // pred_check_branch
      %32 = sbr.rel (0) target = $region13
    $region12: #{tpu_custom_call.1} parent=1 // pred_region
      %s34 = ssub.s32 128, 128
      %35 = vsyncadd [#allocation6], %s34
      %s37 = sshll.u32 [#allocation7], 4
      %s38 = int_to_ptr.vmem [resolvable:$true] %s37
      %40 = dma.hbm_to_vmem [thread:$0]  %s2, 128, %s38, [#allocation6]
    $region13: #{tpu_custom_call.1} parent=1 // pred_fallthru
      _
    // Predicated region
    $region14: #{tpu_custom_call.1} parent=1 // pred_check
      _
    $region15: #{tpu_custom_call.1} parent=1 // pred_check_branch
      %42 = sbr.rel (0) target = $region17
    $region16: #{tpu_custom_call.1} parent=1 // pred_region
      %43 = dma.done [#allocation3], 256
    $region17: #{tpu_custom_call.1} parent=1 // pred_fallthru
      _
    // Predicated region
    $region18: #{tpu_custom_call.1} parent=1 // pred_check
      _
    $region19: #{tpu_custom_call.1} parent=1 // pred_check_branch
      %45 = sbr.rel (0) target = $region21
    $region20: #{tpu_custom_call.1} parent=1 // pred_region
      %46 = dma.done [#allocation6], 128
    $region21: #{tpu_custom_call.1} parent=1 // pred_fallthru
      _
    // Predicated region
    $region22: #{tpu_custom_call.1} parent=1 // pred_check
      _
    $region23: #{tpu_custom_call.1} parent=1 // pred_check_branch
      %48 = sbr.rel (0) target = $region25
    $region24: #{tpu_custom_call.1} parent=1 // pred_region
      %49 = dma.done [#allocation6], 128
    $region25: #{tpu_custom_call.1} parent=1 // pred_fallthru
      _
    %v50 = vld [vmem:[#allocation5] sm:$0xff]
    %v51 = vld [vmem:[#allocation2] sm:$0xff]
    %v52 = vld [vmem:[#allocation2 + $0x8] sm:$0xff]
    %v54 = vlaneseq
    %v55 = vshrl.u32 %v54, 7
    %v56 = vsub.s32 0, %v55
    %v57 = vrot.slane %v50, %v56
    %v58 = vlaneseq
    %v59 = vshrl.u32 %v58, 7
    %v60 = vsub.s32 1, %v59
    %v61 = vrot.slane %v50, %v60
    %v62 = vlaneseq
    %v63 = vshrl.u32 %v62, 7
    %v64 = vsub.s32 2, %v63
    %v65 = vrot.slane %v50, %v64
    %v66 = vlaneseq
    %v67 = vshrl.u32 %v66, 7
    %v68 = vsub.s32 3, %v67
    %v69 = vrot.slane %v50, %v68
    %v70 = vlaneseq
    %v71 = vshrl.u32 %v70, 7
    %v72 = vsub.s32 4, %v71
    %v73 = vrot.slane %v50, %v72
    %v74 = vlaneseq
    %v75 = vshrl.u32 %v74, 7
    %v76 = vsub.s32 5, %v75
    %v77 = vrot.slane %v50, %v76
    %v78 = vlaneseq
    %v79 = vshrl.u32 %v78, 7
    %v80 = vsub.s32 6, %v79
    %v81 = vrot.slane %v50, %v80
    %v82 = vlaneseq
    %v83 = vshrl.u32 %v82, 7
    %v84 = vsub.s32 7, %v83
    %v85 = vrot.slane %v50, %v84
    %v96 = vcombine.high %v51, %v51
    %v98 = vunpack.c.l.s4 1983009808
    %v99 = vunpack.c.0.s8 %v98
    %v100 = vlaneseq
    %v101 = vshrl.u32 %v100, 7
    %v102 = vsub.s32 %v99, %v101
    %v103 = vrot.slane %v51, %v102
    %v105 = vunpack.c.l.s4 1983009808
    %v106 = vunpack.c.0.s8 %v105
    %v107 = vlaneseq
    %v108 = vshrl.u32 %v107, 7
    %v109 = vsub.s32 %v106, %v108
    %v110 = vrot.slane %v96, %v109
    %v111 = vcombine.high %v103, %v103
    %v112 = vcombine.high %v110, %v110
    %v113 = vcombine.high %v52, %v52
    %v115 = vunpack.c.l.s4 1983009808
    %v116 = vunpack.c.0.s8 %v115
    %v117 = vlaneseq
    %v118 = vshrl.u32 %v117, 7
    %v119 = vsub.s32 %v116, %v118
    %v120 = vrot.slane %v52, %v119
    %v122 = vunpack.c.l.s4 1983009808
    %v123 = vunpack.c.0.s8 %v122
    %v124 = vlaneseq
    %v125 = vshrl.u32 %v124, 7
    %v126 = vsub.s32 %v123, %v125
    %v127 = vrot.slane %v113, %v126
    %v128 = vcombine.high %v120, %v120
    %v129 = vcombine.high %v127, %v127
    %v138 = vmul.f32 %v57, %v103
    %v139 = vmul.f32 %v61, %v111
    %v140 = vmul.f32 %v65, %v110
    %v141 = vmul.f32 %v69, %v112
    %v142 = vmul.f32 %v73, %v120
    %v143 = vmul.f32 %v77, %v128
    %v144 = vmul.f32 %v81, %v127
    %v145 = vmul.f32 %v85, %v129
    %v146 = vld [vmem:[#allocation7] sm:$0xff]
    %v148 = vlaneseq
    %v149 = vshrl.u32 %v148, 7
    %v150 = vsub.s32 0, %v149
    %v151 = vrot.slane %v146, %v150
    %v152 = vlaneseq
    %v153 = vshrl.u32 %v152, 7
    %v154 = vsub.s32 1, %v153
    %v155 = vrot.slane %v146, %v154
    %v156 = vlaneseq
    %v157 = vshrl.u32 %v156, 7
    %v158 = vsub.s32 2, %v157
    %v159 = vrot.slane %v146, %v158
    %v160 = vlaneseq
    %v161 = vshrl.u32 %v160, 7
    %v162 = vsub.s32 3, %v161
    %v163 = vrot.slane %v146, %v162
    %v164 = vlaneseq
    %v165 = vshrl.u32 %v164, 7
    %v166 = vsub.s32 4, %v165
    %v167 = vrot.slane %v146, %v166
    %v168 = vlaneseq
    %v169 = vshrl.u32 %v168, 7
    %v170 = vsub.s32 5, %v169
    %v171 = vrot.slane %v146, %v170
    %v172 = vlaneseq
    %v173 = vshrl.u32 %v172, 7
    %v174 = vsub.s32 6, %v173
    %v175 = vrot.slane %v146, %v174
    %v176 = vlaneseq
    %v177 = vshrl.u32 %v176, 7
    %v178 = vsub.s32 7, %v177
    %v179 = vrot.slane %v146, %v178
    %v188 = vadd.f32 %v138, %v151
    %v189 = vadd.f32 %v139, %v155
    %v190 = vadd.f32 %v140, %v159
    %v191 = vadd.f32 %v141, %v163
    %v192 = vadd.f32 %v142, %v167
    %v193 = vadd.f32 %v143, %v171
    %v194 = vadd.f32 %v144, %v175
    %v195 = vadd.f32 %v145, %v179
    %v196 = vmul.f32 %v188, 0.2
    %v197 = vmul.f32 %v189, 0.2
    %v198 = vmul.f32 %v190, 0.2
    %v199 = vmul.f32 %v191, 0.2
    %v200 = vmul.f32 %v192, 0.2
    %v201 = vmul.f32 %v193, 0.2
    %v202 = vmul.f32 %v194, 0.2
    %v203 = vmul.f32 %v195, 0.2
    %v204 = vmax.f32 %v188, %v196
    %v205 = vmax.f32 %v189, %v197
    %v206 = vmax.f32 %v190, %v198
    %v207 = vmax.f32 %v191, %v199
    %v208 = vmax.f32 %v192, %v200
    %v209 = vmax.f32 %v193, %v201
    %v210 = vmax.f32 %v194, %v202
    %v211 = vmax.f32 %v195, %v203
    %v220 = vcombine.low %v204, %v205
    %v221 = vcombine.low %v206, %v207
    %v223 = vunpack.c.l.s4 1983009808
    %v224 = vunpack.c.0.s8 %v223
    %v225 = vlaneseq
    %v226 = vshrl.u32 %v225, 7
    %v227 = vsub.s32 %v224, %v226
    %v228 = vrot.slane %v220, %v227
    %v230 = vunpack.c.l.s4 1983009808
    %v231 = vunpack.c.0.s8 %v230
    %v232 = vlaneseq
    %v233 = vshrl.u32 %v232, 7
    %v234 = vsub.s32 %v231, %v233
    %v235 = vrot.slane %v221, %v234
    %v236 = vcombine.low %v228, %v235
    %v237 = vcombine.low %v208, %v209
    %v238 = vcombine.low %v210, %v211
    %v240 = vunpack.c.l.s4 1983009808
    %v241 = vunpack.c.0.s8 %v240
    %v242 = vlaneseq
    %v243 = vshrl.u32 %v242, 7
    %v244 = vsub.s32 %v241, %v243
    %v245 = vrot.slane %v237, %v244
    %v247 = vunpack.c.l.s4 1983009808
    %v248 = vunpack.c.0.s8 %v247
    %v249 = vlaneseq
    %v250 = vshrl.u32 %v249, 7
    %v251 = vsub.s32 %v248, %v250
    %v252 = vrot.slane %v238, %v251
    %v253 = vcombine.low %v245, %v252
    %256 = vst [vmem:[#allocation8] sm:$0xff] %v236
    %257 = vst [vmem:[#allocation8 + $0x8] sm:$0xff] %v253
    // Predicated region
    $region26: #{tpu_custom_call.1} parent=1 // pred_check
      _
    $region27: #{tpu_custom_call.1} parent=1 // pred_check_branch
      %259 = sbr.rel (0) target = $region29
    $region28: #{tpu_custom_call.1} parent=1 // pred_region
      %s261 = ssub.s32 256, 256
      %262 = vsyncadd [#allocation4], %s261
      %s264 = sshll.u32 [#allocation8], 4
      %s265 = int_to_ptr.vmem [resolvable:$true] %s264
      %267 = dma.vmem_to_hbm [thread:$0]  %s265, 256, %s3, [#allocation4]
    $region29: #{tpu_custom_call.1} parent=1 // pred_fallthru
      _
    // Predicated region
    $region30: #{tpu_custom_call.1} parent=1 // pred_check
      _
    $region31: #{tpu_custom_call.1} parent=1 // pred_check_branch
      %269 = sbr.rel (0) target = $region33
    $region32: #{tpu_custom_call.1} parent=1 // pred_region
      %270 = dma.done [#allocation4], 256
    $region33: #{tpu_custom_call.1} parent=1 // pred_fallthru
      _
    %271 = vsyncpa [#allocation3], 1
    %272 = vsyncpa [#allocation6], 1
    %273 = vsyncpa [#allocation4], 1

</llo_original>
